<compile_context>
chip_gen: v7x
topology: tpu7x:2x2x1
jax: 0.10.0
libtpu: 0.0.40
codegen_flags: <defaults>
</compile_context>

<pallas_src>
import functools
import math

import jax
import jax.numpy as jnp
from jax.experimental import pallas as pl
from jax.experimental.pallas import tpu as pltpu

GELU_C = math.sqrt(2.0 / math.pi)


def _round_up(n, m):
    return (n + m - 1) // m * m


def _probe_buffered():
    try:
        pl.BlockSpec((8, 128), lambda i: (0, 0), pipeline_mode=pl.Buffered(1))
        return True
    except Exception:
        return False


# Whether single-buffered (resident) blocks are expressible on this jax version.
_HAS_BUFFERED = _probe_buffered()


@functools.lru_cache(maxsize=None)
def _vmem_capacity_bytes():
    """Per-core VMEM capacity (v5e/v6e: 128 MiB; v7x: 64 MiB per TensorCore)."""
    try:
        return int(pltpu.get_tpu_info().vmem_capacity_bytes)
    except Exception:
        return 128 * 1024 * 1024


def _const_spec(shape, index_map):
    """BlockSpec for a block whose index is constant across the grid (weights/biases).

    Single-buffered when supported so resident weights are not duplicated in VMEM;
    when unsupported, the caller's VMEM budget already assumes double buffering.
    """
    if _HAS_BUFFERED:
        return pl.BlockSpec(shape, index_map, pipeline_mode=pl.Buffered(1))
    return pl.BlockSpec(shape, index_map)


def _gelu_f32(h):
    # new_gelu (tanh approximation), identical to the PyTorch reference, kept in f32.
    return 0.5 * h * (1.0 + jnp.tanh(GELU_C * (h + 0.044715 * (h * h * h))))


def _mlp_kernel_resident(x_ref, w1_ref, b1_ref, w2_ref, b2_ref, o_ref):
    # x_ref: (tm, Dp) bf16; w1: (Dp, Hp) bf16; b1: (1, Hp) f32; w2: (Hp, Dp) bf16;
    # b2: (1, Dp) f32.  Both matmuls accumulate in f32 on the MXU.
    h = jnp.dot(x_ref[...], w1_ref[...], preferred_element_type=jnp.float32)
    h = _gelu_f32(h + b1_ref[...])
    out = jnp.dot(h.astype(w2_ref.dtype), w2_ref[...],
                  preferred_element_type=jnp.float32)
    # TODO(synk): nn.Dropout is identity in eval mode (dropout=0.0 here); a training
    # path would draw a keep mask via pltpu.prng_seed / prng_random_bits.
    o_ref[...] = (out + b2_ref[...]).astype(o_ref.dtype)


def _mlp_kernel_htiled(x_ref, w1_ref, b1_ref, w2_ref, b2_ref, o_ref, acc_ref):
    # Second grid axis streams hidden-dim blocks; acc_ref is the (tm, Dp) f32 partial
    # sum of the second matmul, written out (plus b2) on the last H step.
    h_idx = pl.program_id(1)

    @pl.when(h_idx == 0)
    def _():
        acc_ref[...] = jnp.zeros_like(acc_ref)

    h = jnp.dot(x_ref[...], w1_ref[...], preferred_element_type=jnp.float32)
    h = _gelu_f32(h + b1_ref[...])
    acc_ref[...] += jnp.dot(h.astype(w2_ref.dtype), w2_ref[...],
                            preferred_element_type=jnp.float32)

    @pl.when(h_idx == pl.num_programs(1) - 1)
    def _():
        o_ref[...] = (acc_ref[...] + b2_ref[...]).astype(o_ref.dtype)


def prepare_mlp_params(w_fc, b_fc, w_proj, b_proj, *, compute_dtype=jnp.bfloat16):
    """Cast + lane-pad the weights once (hoisted out of the per-call path).

    w_fc: (n_embd, 4n), w_proj: (4n, n_embd) -- already (in, out) layout.
    Returns (w1, b1, w2, b2, D) with feature dims padded to multiples of 128.
    """
    D, H = w_fc.shape
    Dp, Hp = _round_up(D, 128), _round_up(H, 128)
    w1 = w_fc.astype(compute_dtype)
    w2 = w_proj.astype(compute_dtype)
    if (Dp, Hp) != (D, H):
        w1 = jnp.pad(w1, ((0, Dp - D), (0, Hp - H)))
        w2 = jnp.pad(w2, ((0, Hp - H), (0, Dp - D)))
    b1 = jnp.pad(b_fc.astype(jnp.float32), (0, Hp - H)).reshape(1, Hp)
    b2 = jnp.pad(b_proj.astype(jnp.float32), (0, Dp - D)).reshape(1, Dp)
    return w1, b1, w2, b2, D


def _choose_tm(rows, max_tm, block_rows):
    """Row tile: MXU-filling but with <=~10% padded-row waste."""
    max_tm = min(max_tm, block_rows)
    if rows <= 128 or max_tm < 128:
        return min(_round_up(rows, 8), max(_round_up(max_tm, 8), 8))
    best, cand = 128, 128
    while cand <= max_tm:
        if _round_up(rows, cand) <= 1.1 * rows:
            best = cand
        cand += 128
    return best


@functools.partial(jax.jit, static_argnames=("D", "block_rows", "out_dtype"))
def mlp_forward_prepared(x, w1, b1, w2, b2, *, D, block_rows=512, out_dtype=None):
    """x: (B, T, n_embd); w1/b1/w2/b2 from prepare_mlp_params (padded, compute dtype)."""
    B, T, _ = x.shape
    rows = B * T
    Dp, Hp = w1.shape
    out_dtype = x.dtype if out_dtype is None else jnp.dtype(out_dtype)
    compute_dtype = w1.dtype
    cbytes = jnp.dtype(compute_dtype).itemsize
    obytes = jnp.dtype(out_dtype).itemsize

    # Generation-aware VMEM budget (per TensorCore on v7x, which is what matters when
    # the row grid is megacore-sharded and resident weights are replicated per TC).
    cap = _vmem_capacity_bytes()
    vmem_limit = int(0.75 * cap)
    max_tm = 256 if cap <= 64 * 1024 * 1024 else 512
    tm = _choose_tm(rows, max_tm, block_rows)
    rows_p = _round_up(rows, tm)

    x2d = x.reshape(rows, D)
    if x2d.dtype != compute_dtype:
        x2d = x2d.astype(compute_dtype)
    if rows_p != rows or Dp != D:
        x2d = jnp.pad(x2d, ((0, rows_p - rows), (0, Dp - D)))

    weight_buf = 1 if _HAS_BUFFERED else 2  # fallback => resident weights double-buffered

    def _tile_bytes(th):
        """Approximate per-step VMEM footprint for a hidden block of width th."""
        wbuf = weight_buf if th == Hp else 2          # streaming blocks double-buffer
        return (
            wbuf * 2 * Dp * th * cbytes               # W1 + W2 blocks
            + wbuf * th * 4 + weight_buf * Dp * 4     # b1 block + resident b2 (f32)
            + 2 * tm * Dp * cbytes                    # x tile (double buffered)
            + 2 * tm * Dp * obytes                    # out tile (double buffered)
            + tm * th * (4 + cbytes)                  # GELU intermediate f32 + bf16 cast
            + tm * Dp * 4                             # f32 result / accumulator tile
        )

    use_resident = _tile_bytes(Hp) <= vmem_limit
    if use_resident:
        th = Hp
    else:
        # Largest multiple-of-128 divisor of Hp whose per-step footprint fits.
        th, cand = 128, 128
        while cand < Hp:
            if Hp % cand == 0 and _tile_bytes(cand) <= vmem_limit:
                th = cand
            cand += 128

    cost = pl.CostEstimate(
        flops=4 * rows_p * Dp * Hp,                   # two (rows x D x H) matmuls
        transcendentals=rows_p * Hp,                  # one tanh per hidden element
        bytes_accessed=(x2d.size * cbytes + (w1.size + w2.size) * cbytes
                        + (b1.size + b2.size) * 4 + rows_p * Dp * obytes),
    )

    if use_resident:
        out2d = pl.pallas_call(
            _mlp_kernel_resident,
            out_shape=jax.ShapeDtypeStruct((rows_p, Dp), out_dtype),
            grid_spec=pltpu.PrefetchScalarGridSpec(
                num_scalar_prefetch=0,
                grid=(rows_p // tm,),
                in_specs=[
                    pl.BlockSpec((tm, Dp), lambda i: (i, 0)),   # x row tile (pipelined)
                    _const_spec((Dp, Hp), lambda i: (0, 0)),    # W_fc   (resident)
                    _const_spec((1, Hp), lambda i: (0, 0)),     # b_fc
                    _const_spec((Hp, Dp), lambda i: (0, 0)),    # W_proj (resident)
                    _const_spec((1, Dp), lambda i: (0, 0)),     # b_proj
                ],
                out_specs=pl.BlockSpec((tm, Dp), lambda i: (i, 0)),
            ),
            compiler_params=pltpu.CompilerParams(
                dimension_semantics=("parallel",),
                vmem_limit_bytes=vmem_limit,
            ),
            cost_estimate=cost,
        )(x2d, w1, b1, w2, b2)
    else:
        out2d = pl.pallas_call(
            _mlp_kernel_htiled,
            out_shape=jax.ShapeDtypeStruct((rows_p, Dp), out_dtype),
            grid_spec=pltpu.PrefetchScalarGridSpec(
                num_scalar_prefetch=0,
                grid=(rows_p // tm, Hp // th),
                in_specs=[
                    pl.BlockSpec((tm, Dp), lambda i, h: (i, 0)),   # x (constant over h)
                    pl.BlockSpec((Dp, th), lambda i, h: (0, h)),   # W_fc   H-block
                    pl.BlockSpec((1, th), lambda i, h: (0, h)),    # b_fc   H-block
                    pl.BlockSpec((th, Dp), lambda i, h: (h, 0)),   # W_proj H-block
                    _const_spec((1, Dp), lambda i, h: (0, 0)),     # b_proj (resident)
                ],
                out_specs=pl.BlockSpec((tm, Dp), lambda i, h: (i, 0)),
                scratch_shapes=[pltpu.VMEM((tm, Dp), jnp.float32)],
            ),
            compiler_params=pltpu.CompilerParams(
                dimension_semantics=("parallel", "arbitrary"),
                vmem_limit_bytes=vmem_limit,
            ),
            cost_estimate=cost,
        )(x2d, w1, b1, w2, b2)

    return out2d[:rows, :D].reshape(B, T, D)


def mlp_forward(x, w_fc, b_fc, w_proj, b_proj, *, block_rows=512,
                compute_dtype=jnp.bfloat16, out_dtype=None):
    """Convenience wrapper: prepares (casts/pads) weights then runs the fused kernel.
    For repeated calls, call prepare_mlp_params once and use mlp_forward_prepared."""
    w1, b1, w2, b2, D = prepare_mlp_params(w_fc, b_fc, w_proj, b_proj,
                                           compute_dtype=compute_dtype)
    return mlp_forward_prepared(x, w1, b1, w2, b2, D=D, block_rows=block_rows,
                                out_dtype=out_dtype)


def _reference(x2d, w_fc, b_fc, w_proj, b_proj, compute_dtype=jnp.bfloat16):
    """Pure-JAX reference with the same bf16-operand / f32-accumulate numerics."""
    h = jnp.dot(x2d.astype(compute_dtype), w_fc.astype(compute_dtype),
                preferred_element_type=jnp.float32) + b_fc
    h = 0.5 * h * (1.0 + jnp.tanh(GELU_C * (h + 0.044715 * h ** 3)))
    out = jnp.dot(h.astype(compute_dtype), w_proj.astype(compute_dtype),
                  preferred_element_type=jnp.float32) + b_proj
    return out.astype(x2d.dtype)


if __name__ == "__main__":
    # Config: n_embd=32, bias=True, dropout=0.0 (identity). Small demo shapes: B=2, T=8.
    B, T, D = 2, 8, 32
    H = 4 * D

    key = jax.random.PRNGKey(0)
    kx, kw1, kb1, kw2, kb2 = jax.random.split(key, 5)

    x = jax.random.normal(kx, (B, T, D), dtype=jnp.float32)

    # Deterministic parameter init (PyTorch nn.Linear-like uniform bounds),
    # stored pre-transposed as (in_features, out_features).
    bound1 = 1.0 / math.sqrt(D)
    bound2 = 1.0 / math.sqrt(H)
    w_fc = jax.random.uniform(kw1, (D, H), minval=-bound1, maxval=bound1, dtype=jnp.float32)
    b_fc = jax.random.uniform(kb1, (H,), minval=-bound1, maxval=bound1, dtype=jnp.float32)
    w_proj = jax.random.uniform(kw2, (H, D), minval=-bound2, maxval=bound2, dtype=jnp.float32)
    b_proj = jax.random.uniform(kb2, (D,), minval=-bound2, maxval=bound2, dtype=jnp.float32)

    # Weight cast/pad hoisted out of the per-call path.
    w1, b1, w2, b2, D_static = prepare_mlp_params(w_fc, b_fc, w_proj, b_proj)
    out = mlp_forward_prepared(x, w1, b1, w2, b2, D=D_static)
    out = jax.block_until_ready(out)

    ref = _reference(x.reshape(B * T, D), w_fc, b_fc, w_proj, b_proj).reshape(B, T, D)
    assert out.shape == (B, T, D)
    assert out.dtype == x.dtype
    assert jnp.allclose(out, ref, atol=2e-2, rtol=2e-2), "mismatch vs reference"

    print("KERNEL_OK")
</pallas_src>

<mosaic_0001>
module attributes {stable_mosaic.version = 11 : i64} {
  func.func @_mlp_kernel_resident(%arg0: i32, %arg1: memref<16x128xbf16, #tpu.memory_space<vmem>>, %arg2: memref<128x128xbf16, #tpu.memory_space<vmem>>, %arg3: memref<1x128xf32, #tpu.memory_space<vmem>>, %arg4: memref<128x128xbf16, #tpu.memory_space<vmem>>, %arg5: memref<1x128xf32, #tpu.memory_space<vmem>>, %arg6: memref<16x128xf32, #tpu.memory_space<vmem>>) attributes {dimension_semantics = [#tpu.dimension_semantics<parallel>], iteration_bounds = array<i64: 1>, scalar_prefetch = 0 : i64, scratch_operands = 0 : i64, tpu.core_type = #tpu.core_type<tc>, window_params = [{transform_indices = @transform_0, window_bounds = array<i64: 16, 128>}, {pipeline_mode = #tpu.pipeline_mode<synchronous>, transform_indices = @transform_1, window_bounds = array<i64: 128, 128>}, {pipeline_mode = #tpu.pipeline_mode<synchronous>, transform_indices = @transform_2, window_bounds = array<i64: 1, 128>}, {pipeline_mode = #tpu.pipeline_mode<synchronous>, transform_indices = @transform_3, window_bounds = array<i64: 128, 128>}, {pipeline_mode = #tpu.pipeline_mode<synchronous>, transform_indices = @transform_4, window_bounds = array<i64: 1, 128>}, {transform_indices = @transform_5, window_bounds = array<i64: 16, 128>}]} {
    %c0 = arith.constant 0 : index
    %c0_0 = arith.constant 0 : index
    %0 = vector.load %arg1[%c0, %c0_0] : memref<16x128xbf16, #tpu.memory_space<vmem>>, vector<16x128xbf16>
    %c0_1 = arith.constant 0 : index
    %c0_2 = arith.constant 0 : index
    %1 = vector.load %arg2[%c0_1, %c0_2] : memref<128x128xbf16, #tpu.memory_space<vmem>>, vector<128x128xbf16>
    %cst = arith.constant dense<0.000000e+00> : vector<16x128xf32>
    %2 = tpu.matmul %0, %1, %cst {dimension_numbers = #tpu.dot_dimension_numbers<[1], [0], [0], [1], [0, 0, 1, 1], [], []>} : vector<16x128xbf16>, vector<128x128xbf16>, vector<16x128xf32> -> vector<16x128xf32>
    %c0_3 = arith.constant 0 : index
    %c0_4 = arith.constant 0 : index
    %3 = vector.load %arg3[%c0_3, %c0_4] : memref<1x128xf32, #tpu.memory_space<vmem>>, vector<1x128xf32>
    %4 = vector.broadcast %3 : vector<1x128xf32> to vector<16x128xf32>
    %5 = arith.addf %2, %4 : vector<16x128xf32>
    %cst_5 = arith.constant 5.000000e-01 : f32
    %6 = vector.broadcast %cst_5 : f32 to vector<16x128xf32>
    %7 = arith.mulf %6, %5 : vector<16x128xf32>
    %8 = arith.mulf %5, %5 : vector<16x128xf32>
    %9 = arith.mulf %8, %5 : vector<16x128xf32>
    %cst_6 = arith.constant 4.471500e-02 : f32
    %10 = vector.broadcast %cst_6 : f32 to vector<16x128xf32>
    %11 = arith.mulf %10, %9 : vector<16x128xf32>
    %12 = arith.addf %5, %11 : vector<16x128xf32>
    %cst_7 = arith.constant 0.797884583 : f32
    %13 = vector.broadcast %cst_7 : f32 to vector<16x128xf32>
    %14 = arith.mulf %13, %12 : vector<16x128xf32>
    %15 = math.tanh %14 : vector<16x128xf32>
    %cst_8 = arith.constant 1.000000e+00 : f32
    %16 = vector.broadcast %cst_8 : f32 to vector<16x128xf32>
    %17 = arith.addf %16, %15 : vector<16x128xf32>
    %18 = arith.mulf %7, %17 : vector<16x128xf32>
    %19 = arith.truncf %18 : vector<16x128xf32> to vector<16x128xbf16>
    %c0_9 = arith.constant 0 : index
    %c0_10 = arith.constant 0 : index
    %20 = vector.load %arg4[%c0_9, %c0_10] : memref<128x128xbf16, #tpu.memory_space<vmem>>, vector<128x128xbf16>
    %cst_11 = arith.constant dense<0.000000e+00> : vector<16x128xf32>
    %21 = tpu.matmul %19, %20, %cst_11 {dimension_numbers = #tpu.dot_dimension_numbers<[1], [0], [0], [1], [0, 0, 1, 1], [], []>} : vector<16x128xbf16>, vector<128x128xbf16>, vector<16x128xf32> -> vector<16x128xf32>
    %c0_12 = arith.constant 0 : index
    %c0_13 = arith.constant 0 : index
    %22 = vector.load %arg5[%c0_12, %c0_13] : memref<1x128xf32, #tpu.memory_space<vmem>>, vector<1x128xf32>
    %23 = vector.broadcast %22 : vector<1x128xf32> to vector<16x128xf32>
    %24 = arith.addf %21, %23 : vector<16x128xf32>
    %c0_14 = arith.constant 0 : index
    %c0_15 = arith.constant 0 : index
    %25 = vector.load %arg6[%c0_14, %c0_15] : memref<16x128xf32, #tpu.memory_space<vmem>>, vector<16x128xf32>
    tpu.vector_store %arg6[%c0_14, %c0_15], %24 {strides = array<i32>} : memref<16x128xf32, #tpu.memory_space<vmem>>, vector<16x128xf32>,
    return
  }
  func.func @transform_0(%arg0: i32) -> (i32, i32) {
    %c0_i32 = arith.constant 0 : i32
    %c0_i32_0 = arith.constant 0 : i32
    return %arg0, %c0_i32 : i32, i32
  }
  func.func @transform_1(%arg0: i32) -> (i32, i32) {
    %c0_i32 = arith.constant 0 : i32
    %c0_i32_0 = arith.constant 0 : i32
    %c0_i32_1 = arith.constant 0 : i32
    return %c0_i32, %c0_i32_0 : i32, i32
  }
  func.func @transform_2(%arg0: i32) -> (i32, i32) {
    %c0_i32 = arith.constant 0 : i32
    %c0_i32_0 = arith.constant 0 : i32
    %c0_i32_1 = arith.constant 0 : i32
    return %c0_i32, %c0_i32_0 : i32, i32
  }
  func.func @transform_3(%arg0: i32) -> (i32, i32) {
    %c0_i32 = arith.constant 0 : i32
    %c0_i32_0 = arith.constant 0 : i32
    %c0_i32_1 = arith.constant 0 : i32
    return %c0_i32, %c0_i32_0 : i32, i32
  }
  func.func @transform_4(%arg0: i32) -> (i32, i32) {
    %c0_i32 = arith.constant 0 : i32
    %c0_i32_0 = arith.constant 0 : i32
    %c0_i32_1 = arith.constant 0 : i32
    return %c0_i32, %c0_i32_0 : i32, i32
  }
  func.func @transform_5(%arg0: i32) -> (i32, i32) {
    %c0_i32 = arith.constant 0 : i32
    %c0_i32_0 = arith.constant 0 : i32
    return %arg0, %c0_i32 : i32, i32
  }
}

</mosaic_0001>

<llo_original>
// kernel: mlp_forward_prepared.1
$region0: #{mlp_forward_prepared.1}
  #allocation0 [shape = 'u32[]', space=smem, size = 0x4, offset = 0x4, fixed_abs, tag = 'smem constant byte address 0x4 - core index']
  #allocation1 [shape = 'u32[144,128]{1,0:T(1,128)}', space=vmem, size = 0x12000, scoped, tag = 'internal scratch']
  %s0 = inlined_call_operand.hbm [shape: bf16[16,128], index: 0, kind: input, shape index: {}]
  %s1 = inlined_call_operand.hbm [shape: bf16[128,128], index: 1, kind: input, shape index: {}]
  %s2 = inlined_call_operand.hbm [shape: f32[1,128], index: 2, kind: input, shape index: {}]
  %s3 = inlined_call_operand.hbm [shape: bf16[128,128], index: 3, kind: input, shape index: {}]
  %s4 = inlined_call_operand.hbm [shape: f32[1,128], index: 4, kind: input, shape index: {}]
  %s5 = inlined_call_operand.hbm [shape: f32[16,128], index: 5, kind: output, shape index: {}]
  %s6 = sld [smem:[#allocation0]]
  $region50: #{mlp_forward_prepared.1} parent=0
    _
  %s8 = ssub.s32 1, %s6
  %s9 = scalar_select 0, %s8, %s6
  $region1: #{mlp_forward_prepared.1} parent=0
    #allocation2 [shape = 'u8[4096]{0}', space=vmem, size = 0x1000, scoped, tag = 'input window, operand 0, single buffered']
    #allocation3 [shape = 's32[1]{0}', space=sflag, size = 0x4, scoped, tag = 'scoped memory for mlp_forward_prepared.1']
    #allocation4 [shape = 's32[1]{0}', space=sflag, size = 0x4, scoped, tag = 'scoped memory for mlp_forward_prepared.1']
    #allocation5 [shape = 'u8[32768]{0}', space=vmem, size = 0x8000, scoped, tag = 'input window, operand 1, single buffered']
    #allocation6 [shape = 's32[1]{0}', space=sflag, size = 0x4, scoped, tag = 'scoped memory for mlp_forward_prepared.1']
    #allocation7 [shape = 'u8[512]{0}', space=vmem, size = 0x400, scoped, tag = 'input window, operand 2, single buffered']
    #allocation8 [shape = 'u8[32768]{0}', space=vmem, size = 0x8000, scoped, tag = 'input window, operand 3, single buffered']
    #allocation9 [shape = 's32[1]{0}', space=sflag, size = 0x4, scoped, tag = 'scoped memory for mlp_forward_prepared.1']
    #allocation10 [shape = 'u8[512]{0}', space=vmem, size = 0x400, scoped, tag = 'input window, operand 4, single buffered']
    #allocation11 [shape = 'u8[8192]{0}', space=vmem, size = 0x2000, scoped, tag = 'output window, operand 0, single buffered']
    %10 = vsyncpa [#allocation3], 0
    %11 = vsyncpa [#allocation6], 0
    %12 = vsyncpa [#allocation9], 0
    %13 = vsyncpa [#allocation4], 0
    // Predicated region
    $region2: #{mlp_forward_prepared.1} parent=1 // pred_check
      _
    $region3: #{mlp_forward_prepared.1} parent=1 // pred_check_branch
      %15 = sbr.rel (0) target = $region5
    $region4: #{mlp_forward_prepared.1} parent=1 // pred_region
      %s17 = ssub.s32 128, 128
      %18 = vsyncadd [#allocation3], %s17
      %s19 = sshll.u32 [#allocation2], 4
      %s20 = int_to_ptr.vmem [resolvable:$true] %s19
      %25 = dma.hbm_to_vmem [thread:$0]  %s0, 128, %s20, [#allocation3], 64, 64, 4
    $region5: #{mlp_forward_prepared.1} parent=1 // pred_fallthru
      _
    // Predicated region
    $region6: #{mlp_forward_prepared.1} parent=1 // pred_check
      _
    $region7: #{mlp_forward_prepared.1} parent=1 // pred_check_branch
      %27 = sbr.rel (0) target = $region9
    $region8: #{mlp_forward_prepared.1} parent=1 // pred_region
      %s29 = ssub.s32 1024, 1024
      %30 = vsyncadd [#allocation6], %s29
      %s31 = sshll.u32 [#allocation5], 4
      %s32 = int_to_ptr.vmem [resolvable:$true] %s31
      %37 = dma.hbm_to_vmem [thread:$0]  %s1, 1024, %s32, [#allocation6], 64, 64, 4
    $region9: #{mlp_forward_prepared.1} parent=1 // pred_fallthru
      _
    // Predicated region
    $region10: #{mlp_forward_prepared.1} parent=1 // pred_check
      _
    $region11: #{mlp_forward_prepared.1} parent=1 // pred_check_branch
      %39 = sbr.rel (0) target = $region13
    $region12: #{mlp_forward_prepared.1} parent=1 // pred_region
      %s41 = ssub.s32 16, 16
      %42 = vsyncadd [#allocation6], %s41
      %s44 = sshll.u32 [#allocation7], 4
      %s45 = int_to_ptr.vmem [resolvable:$true] %s44
      %47 = dma.hbm_to_vmem [thread:$0]  %s2, 16, %s45, [#allocation6]
    $region13: #{mlp_forward_prepared.1} parent=1 // pred_fallthru
      _
    // Predicated region
    $region14: #{mlp_forward_prepared.1} parent=1 // pred_check
      _
    $region15: #{mlp_forward_prepared.1} parent=1 // pred_check_branch
      %49 = sbr.rel (0) target = $region17
    $region16: #{mlp_forward_prepared.1} parent=1 // pred_region
      %s51 = ssub.s32 1024, 1024
      %52 = vsyncadd [#allocation9], %s51
      %s53 = sshll.u32 [#allocation8], 4
      %s54 = int_to_ptr.vmem [resolvable:$true] %s53
      %59 = dma.hbm_to_vmem [thread:$0]  %s3, 1024, %s54, [#allocation9], 64, 64, 4
    $region17: #{mlp_forward_prepared.1} parent=1 // pred_fallthru
      _
    // Predicated region
    $region18: #{mlp_forward_prepared.1} parent=1 // pred_check
      _
    $region19: #{mlp_forward_prepared.1} parent=1 // pred_check_branch
      %61 = sbr.rel (0) target = $region21
    $region20: #{mlp_forward_prepared.1} parent=1 // pred_region
      %s63 = ssub.s32 16, 16
      %64 = vsyncadd [#allocation9], %s63
      %s66 = sshll.u32 [#allocation10], 4
      %s67 = int_to_ptr.vmem [resolvable:$true] %s66
      %69 = dma.hbm_to_vmem [thread:$0]  %s4, 16, %s67, [#allocation9]
    $region21: #{mlp_forward_prepared.1} parent=1 // pred_fallthru
      _
    // Predicated region
    $region22: #{mlp_forward_prepared.1} parent=1 // pred_check
      _
    $region23: #{mlp_forward_prepared.1} parent=1 // pred_check_branch
      %71 = sbr.rel (0) target = $region25
    $region24: #{mlp_forward_prepared.1} parent=1 // pred_region
      %72 = dma.done [#allocation3], 128
    $region25: #{mlp_forward_prepared.1} parent=1 // pred_fallthru
      _
    // Predicated region
    $region26: #{mlp_forward_prepared.1} parent=1 // pred_check
      _
    $region27: #{mlp_forward_prepared.1} parent=1 // pred_check_branch
      %74 = sbr.rel (0) target = $region29
    $region28: #{mlp_forward_prepared.1} parent=1 // pred_region
      %75 = dma.done [#allocation6], 1024
    $region29: #{mlp_forward_prepared.1} parent=1 // pred_fallthru
      _
    // Predicated region
    $region30: #{mlp_forward_prepared.1} parent=1 // pred_check
      _
    $region31: #{mlp_forward_prepared.1} parent=1 // pred_check_branch
      %77 = sbr.rel (0) target = $region33
    $region32: #{mlp_forward_prepared.1} parent=1 // pred_region
      %78 = dma.done [#allocation6], 16
    $region33: #{mlp_forward_prepared.1} parent=1 // pred_fallthru
      _
    // Predicated region
    $region34: #{mlp_forward_prepared.1} parent=1 // pred_check
      _
    $region35: #{mlp_forward_prepared.1} parent=1 // pred_check_branch
      %80 = sbr.rel (0) target = $region37
    $region36: #{mlp_forward_prepared.1} parent=1 // pred_region
      %81 = dma.done [#allocation9], 1024
    $region37: #{mlp_forward_prepared.1} parent=1 // pred_fallthru
      _
    // Predicated region
    $region38: #{mlp_forward_prepared.1} parent=1 // pred_check
      _
    $region39: #{mlp_forward_prepared.1} parent=1 // pred_check_branch
      %83 = sbr.rel (0) target = $region41
    $region40: #{mlp_forward_prepared.1} parent=1 // pred_region
      %84 = dma.done [#allocation9], 16
    $region41: #{mlp_forward_prepared.1} parent=1 // pred_fallthru
      _
    %v86 = vld [vmem:[#allocation2] sm:$0xf]
    %v87 = vld [vmem:[#allocation2 + $0x4] sm:$0xf]
    %v88 = vld [vmem:[#allocation5] sm:$0xf]
    %v89 = vld [vmem:[#allocation5 + $0x4] sm:$0xf]
    %v90 = vld [vmem:[#allocation5 + $0x8] sm:$0xf]
    %v91 = vld [vmem:[#allocation5 + $0xc] sm:$0xf]
    %v92 = vld [vmem:[#allocation5 + $0x10] sm:$0xf]
    %v93 = vld [vmem:[#allocation5 + $0x14] sm:$0xf]
    %v94 = vld [vmem:[#allocation5 + $0x18] sm:$0xf]
    %v95 = vld [vmem:[#allocation5 + $0x1c] sm:$0xf]
    %v96 = vld [vmem:[#allocation5 + $0x20] sm:$0xf]
    %v97 = vld [vmem:[#allocation5 + $0x24] sm:$0xf]
    %v98 = vld [vmem:[#allocation5 + $0x28] sm:$0xf]
    %v99 = vld [vmem:[#allocation5 + $0x2c] sm:$0xf]
    %v100 = vld [vmem:[#allocation5 + $0x30] sm:$0xf]
    %v101 = vld [vmem:[#allocation5 + $0x34] sm:$0xf]
    %v102 = vld [vmem:[#allocation5 + $0x38] sm:$0xf]
    %v103 = vld [vmem:[#allocation5 + $0x3c] sm:$0xf]
    %v104 = vld [vmem:[#allocation7] sm:$0x1]
    %v106 = vlaneseq
    %v107 = vshrl.u32 %v106, 7
    %v108 = vsub.s32 0, %v107
    %v109 = vrot.slane %v104, %v108
    %v113 = vunpack.c.l.b16 %v86
    %v114 = vunpack.c.l.b16 %v87
    %v115 = vpack.c.b16 %v114, %v113
    %v133 = vunpack.c.l.b16 %v88
    %v134 = vunpack.c.l.b16 %v89
    %v135 = vunpack.c.l.b16 %v90
    %v136 = vunpack.c.l.b16 %v91
    %v137 = vunpack.c.l.b16 %v92
    %v138 = vunpack.c.l.b16 %v93
    %v139 = vunpack.c.l.b16 %v94
    %v140 = vunpack.c.l.b16 %v95
    %v141 = vunpack.c.l.b16 %v96
    %v142 = vunpack.c.l.b16 %v97
    %v143 = vunpack.c.l.b16 %v98
    %v144 = vunpack.c.l.b16 %v99
    %v145 = vunpack.c.l.b16 %v100
    %v146 = vunpack.c.l.b16 %v101
    %v147 = vunpack.c.l.b16 %v102
    %v148 = vunpack.c.l.b16 %v103
    %v149 = vpack.c.b16 %v134, %v133
    %v150 = vpack.c.b16 %v136, %v135
    %v151 = vpack.c.b16 %v138, %v137
    %v152 = vpack.c.b16 %v140, %v139
    %v153 = vpack.c.b16 %v142, %v141
    %v154 = vpack.c.b16 %v144, %v143
    %v155 = vpack.c.b16 %v146, %v145
    %v156 = vpack.c.b16 %v148, %v147
    %165 = vmatprep.subr.bf16.mxu0 0
    %166 = vmatpush1.bf16.msra.mxu0 %v149
    %167 = vmatprep.subr.bf16.mxu0 0
    %168 = vmatpush1.bf16.msra.mxu0 %v150
    %169 = vmatprep.subr.bf16.mxu0 0
    %170 = vmatpush1.bf16.msra.mxu0 %v151
    %171 = vmatprep.subr.bf16.mxu0 0
    %172 = vmatpush1.bf16.msra.mxu0 %v152
    %173 = vmatprep.subr.bf16.mxu0 0
    %174 = vmatpush1.bf16.msra.mxu0 %v153
    %175 = vmatprep.subr.bf16.mxu0 0
    %176 = vmatpush1.bf16.msra.mxu0 %v154
    %177 = vmatprep.subr.bf16.mxu0 0
    %178 = vmatpush1.bf16.msra.mxu0 %v155
    %179 = vmatprep.subr.bf16.mxu0 0
    %180 = vmatpush1.bf16.msra.mxu0 %v156
    %181 = vmatprep.subr.bf16.mxu0 0
    %182 = vmatpush1.bf16.msra.mxu0 0
    %183 = vmatprep.subr.bf16.mxu0 0
    %184 = vmatpush1.bf16.msra.mxu0 0
    %185 = vmatprep.subr.bf16.mxu0 0
    %186 = vmatpush1.bf16.msra.mxu0 0
    %187 = vmatprep.subr.bf16.mxu0 0
    %188 = vmatpush1.bf16.msra.mxu0 0
    %189 = vmatprep.subr.bf16.mxu0 0
    %190 = vmatpush1.bf16.msra.mxu0 0
    %191 = vmatprep.subr.bf16.mxu0 0
    %192 = vmatpush1.bf16.msra.mxu0 0
    %193 = vmatprep.subr.bf16.mxu0 0
    %194 = vmatpush1.bf16.msra.mxu0 0
    %195 = vmatprep.subr.bf16.mxu0 0
    %196 = vmatpush1.bf16.msra.mxu0 0
    %197 = vmatprep.mubr.bf16.mxu0 0
    %198 = vmatmul.mubr.bf16.gmra.mrb[0].mxu0 %v115
    %v199 = vpop.f32.mrb[0].mxu0
    %v200 = vadd.f32 %v109, %v199
    %v201 = vpop.f32.mrb[0].mxu0
    %v202 = vpop.f32.mrb[0].mxu0
    %v203 = vadd.f32 %v109, %v202
    %v204 = vpop.f32.mrb[0].mxu0
    %205 = vdwg.mxu0
    %v206 = vmul.f32 %v200, 0.5
    %v207 = vmul.f32 %v203, 0.5
    %v208 = vmul.f32 %v200, %v200
    %v209 = vmul.f32 %v203, %v203
    %v210 = vmul.f32 %v208, %v200
    %v211 = vmul.f32 %v209, %v203
    %v212 = vmul.f32 %v210, 0.044715
    %v213 = vmul.f32 %v211, 0.044715
    %v214 = vadd.f32 %v200, %v212
    %v215 = vadd.f32 %v203, %v213
    %v216 = vmul.f32 %v214, 0.7978846
    %v217 = vmul.f32 %v215, 0.7978846
    %v218 = vtanh.pop %v216
    %v219 = vtanh.pop %v217
    %v220 = vadd.f32 %v218, 1.0
    %v221 = vadd.f32 %v219, 1.0
    %v222 = vmul.f32 %v206, %v220
    %v223 = vmul.f32 %v207, %v221
    %v224 = vpack.c.bf16 %v223, %v222
    %v225 = vld [vmem:[#allocation8] sm:$0xf]
    %v226 = vld [vmem:[#allocation8 + $0x4] sm:$0xf]
    %v227 = vld [vmem:[#allocation8 + $0x8] sm:$0xf]
    %v228 = vld [vmem:[#allocation8 + $0xc] sm:$0xf]
    %v229 = vld [vmem:[#allocation8 + $0x10] sm:$0xf]
    %v230 = vld [vmem:[#allocation8 + $0x14] sm:$0xf]
    %v231 = vld [vmem:[#allocation8 + $0x18] sm:$0xf]
    %v232 = vld [vmem:[#allocation8 + $0x1c] sm:$0xf]
    %v233 = vld [vmem:[#allocation8 + $0x20] sm:$0xf]
    %v234 = vld [vmem:[#allocation8 + $0x24] sm:$0xf]
    %v235 = vld [vmem:[#allocation8 + $0x28] sm:$0xf]
    %v236 = vld [vmem:[#allocation8 + $0x2c] sm:$0xf]
    %v237 = vld [vmem:[#allocation8 + $0x30] sm:$0xf]
    %v238 = vld [vmem:[#allocation8 + $0x34] sm:$0xf]
    %v239 = vld [vmem:[#allocation8 + $0x38] sm:$0xf]
    %v240 = vld [vmem:[#allocation8 + $0x3c] sm:$0xf]
    %v241 = vld [vmem:[#allocation10] sm:$0x1]
    %v243 = vlaneseq
    %v244 = vshrl.u32 %v243, 7
    %v245 = vsub.s32 0, %v244
    %v246 = vrot.slane %v241, %v245
    %v264 = vunpack.c.l.b16 %v225
    %v265 = vunpack.c.l.b16 %v226
    %v266 = vunpack.c.l.b16 %v227
    %v267 = vunpack.c.l.b16 %v228
    %v268 = vunpack.c.l.b16 %v229
    %v269 = vunpack.c.l.b16 %v230
    %v270 = vunpack.c.l.b16 %v231
    %v271 = vunpack.c.l.b16 %v232
    %v272 = vunpack.c.l.b16 %v233
    %v273 = vunpack.c.l.b16 %v234
    %v274 = vunpack.c.l.b16 %v235
    %v275 = vunpack.c.l.b16 %v236
    %v276 = vunpack.c.l.b16 %v237
    %v277 = vunpack.c.l.b16 %v238
    %v278 = vunpack.c.l.b16 %v239
    %v279 = vunpack.c.l.b16 %v240
    %v280 = vpack.c.b16 %v265, %v264
    %v281 = vpack.c.b16 %v267, %v266
    %v282 = vpack.c.b16 %v269, %v268
    %v283 = vpack.c.b16 %v271, %v270
    %v284 = vpack.c.b16 %v273, %v272
    %v285 = vpack.c.b16 %v275, %v274
    %v286 = vpack.c.b16 %v277, %v276
    %v287 = vpack.c.b16 %v279, %v278
    %296 = vmatprep.subr.bf16.mxu0 0
    %297 = vmatpush1.bf16.msra.mxu0 %v280
    %298 = vmatprep.subr.bf16.mxu0 0
    %299 = vmatpush1.bf16.msra.mxu0 %v281
    %300 = vmatprep.subr.bf16.mxu0 0
    %301 = vmatpush1.bf16.msra.mxu0 %v282
    %302 = vmatprep.subr.bf16.mxu0 0
    %303 = vmatpush1.bf16.msra.mxu0 %v283
    %304 = vmatprep.subr.bf16.mxu0 0
    %305 = vmatpush1.bf16.msra.mxu0 %v284
    %306 = vmatprep.subr.bf16.mxu0 0
    %307 = vmatpush1.bf16.msra.mxu0 %v285
    %308 = vmatprep.subr.bf16.mxu0 0
    %309 = vmatpush1.bf16.msra.mxu0 %v286
    %310 = vmatprep.subr.bf16.mxu0 0
    %311 = vmatpush1.bf16.msra.mxu0 %v287
    %312 = vmatprep.subr.bf16.mxu0 0
    %313 = vmatpush1.bf16.msra.mxu0 0
    %314 = vmatprep.subr.bf16.mxu0 0
    %315 = vmatpush1.bf16.msra.mxu0 0
    %316 = vmatprep.subr.bf16.mxu0 0
    %317 = vmatpush1.bf16.msra.mxu0 0
    %318 = vmatprep.subr.bf16.mxu0 0
    %319 = vmatpush1.bf16.msra.mxu0 0
    %320 = vmatprep.subr.bf16.mxu0 0
    %321 = vmatpush1.bf16.msra.mxu0 0
    %322 = vmatprep.subr.bf16.mxu0 0
    %323 = vmatpush1.bf16.msra.mxu0 0
    %324 = vmatprep.subr.bf16.mxu0 0
    %325 = vmatpush1.bf16.msra.mxu0 0
    %326 = vmatprep.subr.bf16.mxu0 0
    %327 = vmatpush1.bf16.msra.mxu0 0
    %328 = vmatprep.mubr.bf16.mxu0 0
    %329 = vmatmul.mubr.bf16.gmra.mrb[0].mxu0 %v224
    %v330 = vpop.f32.mrb[0].mxu0
    %v331 = vadd.f32 %v246, %v330
    %v332 = vpop.f32.mrb[0].mxu0
    %v333 = vpop.f32.mrb[0].mxu0
    %v334 = vadd.f32 %v246, %v333
    %v335 = vpop.f32.mrb[0].mxu0
    %336 = vdwg.mxu0
    %337 = vst [vmem:[#allocation11] sm:$0xff] %v331
    %338 = vst [vmem:[#allocation11 + $0x8] sm:$0xff] %v334
    // Predicated region
    $region42: #{mlp_forward_prepared.1} parent=1 // pred_check
      _
    $region43: #{mlp_forward_prepared.1} parent=1 // pred_check_branch
      %340 = sbr.rel (0) target = $region45
    $region44: #{mlp_forward_prepared.1} parent=1 // pred_region
      %s342 = ssub.s32 256, 256
      %343 = vsyncadd [#allocation4], %s342
      %s344 = sshll.u32 [#allocation11], 4
      %s345 = int_to_ptr.vmem [resolvable:$true] %s344
      %350 = dma.vmem_to_hbm [thread:$0]  %s345, 256, %s5, [#allocation4], 128, 128, 8
    $region45: #{mlp_forward_prepared.1} parent=1 // pred_fallthru
      _
    // Predicated region
    $region46: #{mlp_forward_prepared.1} parent=1 // pred_check
      _
    $region47: #{mlp_forward_prepared.1} parent=1 // pred_check_branch
      %352 = sbr.rel (0) target = $region49
    $region48: #{mlp_forward_prepared.1} parent=1 // pred_region
      %353 = dma.done [#allocation4], 256
    $region49: #{mlp_forward_prepared.1} parent=1 // pred_fallthru
      _
    %354 = vsyncpa [#allocation3], 1
    %355 = vsyncpa [#allocation6], 1
    %356 = vsyncpa [#allocation9], 1
    %357 = vsyncpa [#allocation4], 1

</llo_original>
